<compile_context>
chip_gen: v6e
topology: v6e:2x2x1
jax: 0.10.0
libtpu: 0.0.40
codegen_flags: <defaults>
</compile_context>

<pallas_src>
import jax
import jax.numpy as jnp
from jax.experimental import pallas as pl
from jax.experimental.pallas import tpu as pltpu


# ---------------------------------------------------------------------------------------------
# Parameter packing (done once at init time, reused across every forward call).
# ---------------------------------------------------------------------------------------------
def pack_deconv_params(weight, bias, dtype=None):
    """PyTorch ConvTranspose3d params -> GEMM operands.

    weight: (Cin, Cout, 2, 2, 2) -> wmat (Cin, 8*Cout), columns ordered (kd, kh, kw, co).
    bias:   (Cout,)              -> bmat (1, 8*Cout), tiled over the 8 kernel offsets.
    """
    cin, cout = weight.shape[0], weight.shape[1]
    assert weight.shape[2:] == (2, 2, 2)
    wmat = jnp.transpose(weight, (0, 2, 3, 4, 1)).reshape(cin, 8 * cout)
    bmat = jnp.tile(bias, (8,)).reshape(1, 8 * cout)
    if dtype is not None:
        wmat = wmat.astype(dtype)
        bmat = bmat.astype(dtype)
    return wmat, bmat


# ---------------------------------------------------------------------------------------------
# Kernel
# ---------------------------------------------------------------------------------------------
def _deconv_fused_kernel(x_ref, w_ref, b_ref, o_ref):
    """One grid step: th*W input voxels of a single (n, d) slice.

    x_ref: (th*W, Cin)
    w_ref: (Cin, 8*Cout)   columns ordered (kd, kh, kw, co)
    b_ref: (1, 8*Cout)
    o_ref: (2, th, 2, W, 2*Cout)  ==  (kd, h, kh, w, kw*Cout + co)
    """
    _, th, _, w_sz, two_c = o_ref.shape
    acc = jnp.dot(x_ref[...], w_ref[...], preferred_element_type=jnp.float32)
    y = jnp.maximum(acc + b_ref[...].astype(jnp.float32), 0.0).astype(o_ref.dtype)
    # (th*W, 8*Cout) -> (th, W, 8*Cout): pure sublane regrouping (W % 8 == 0 on the tiled
    # path, or th == 1 on the generic path) -> no data movement.
    y = y.reshape(th, w_sz, 4 * two_c)
    for kd in range(2):
        for kh in range(2):
            c0 = (2 * kd + kh) * two_c
            # Interleaving into the 2x-upsampled output is done purely by the block layout:
            # these are plain indexed stores, no post-kernel transpose needed.
            o_ref[kd, :, kh, :, :] = y[:, :, c0:c0 + two_c]


def _pick_th(num_bd, h, w, target_rows):
    """Rows per step = th*W.  Prefer a divisor of H (no ragged tail) and >= 2 grid steps."""
    th = max(1, min(h, target_rows // max(w, 1)))
    for t in range(th, 0, -1):
        if h % t == 0:
            th = t
            break
    while num_bd * pl.cdiv(h, th) < 2 and th > 1:   # v7x: 2 TensorCores want >= 2 steps
        th = max(1, th // 2)
    return th


# ---------------------------------------------------------------------------------------------
# Wrappers
# ---------------------------------------------------------------------------------------------
def upsampling_deconv_block_ndhwc(x, wmat, bmat, *, out_dtype=None, th=None, target_rows=1024):
    """ConvTranspose3d(k=2, s=2, p=0) + ReLU, channels-last (NDHWC) in/out.

    x:    (N, D, H, W, Cin)
    wmat: (Cin, 8*Cout), bmat: (1, 8*Cout)   (see pack_deconv_params; pack once, reuse)
    returns (N, 2D, 2H, 2W, Cout) in out_dtype (default: x.dtype).
    """
    n, d, h, w, cin = x.shape
    assert wmat.shape[0] == cin and wmat.shape[1] % 8 == 0
    assert bmat.shape == (1, wmat.shape[1])
    cout = wmat.shape[1] // 8
    out_dtype = x.dtype if out_dtype is None else out_dtype
    num_bd = n * d
    ncols = 8 * cout

    if w % 8 == 0:
        # Main path: flatten (h, w) voxels into GEMM rows; th full-W rows per step.
        th_eff = _pick_th(num_bd, h, w, target_rows) if th is None else max(1, min(int(th), h))
        x_in = x.reshape(num_bd, h * w, cin)                                   # free reshape
        x_spec = pl.BlockSpec((None, th_eff * w, cin), lambda b, t: (b, t, 0))
    else:
        # Generic path for W not a multiple of 8: one input row of W voxels per step
        # (avoids any sublane-regrouping reshape across a ragged W). Correct for any W.
        th_eff = 1
        x_in = x.reshape(num_bd, h, w, cin)                                    # free reshape
        x_spec = pl.BlockSpec((None, None, w, cin), lambda b, t: (b, t, 0, 0))

    grid = (num_bd, pl.cdiv(h, th_eff))
    rows = th_eff * w

    # VMEM budget: double-buffered input/output tiles + (double-buffered) resident weight/bias
    # + f32 accumulator temporaries. Capped at 48 MiB so it is legal on v7x (64 MiB physical).
    est = (2 * rows * cin * x.dtype.itemsize
           + 2 * rows * ncols * jnp.dtype(out_dtype).itemsize
           + rows * ncols * 4
           + 2 * (cin * ncols + ncols) * wmat.dtype.itemsize)
    vmem_limit = int(min(48 * 1024 * 1024, max(8 * 1024 * 1024, 2 * est)))

    out6 = pl.pallas_call(
        _deconv_fused_kernel,
        out_shape=jax.ShapeDtypeStruct((num_bd, 2, h, 2, w, 2 * cout), out_dtype),
        grid=grid,
        in_specs=[
            x_spec,
            pl.BlockSpec((cin, ncols), lambda b, t: (0, 0)),   # resident weight
            pl.BlockSpec((1, ncols), lambda b, t: (0, 0)),     # resident bias
        ],
        out_specs=pl.BlockSpec((None, 2, th_eff, 2, w, 2 * cout),
                               lambda b, t: (b, 0, t, 0, 0, 0)),
        compiler_params=pltpu.CompilerParams(
            dimension_semantics=("parallel", "parallel"),
            vmem_limit_bytes=vmem_limit,
        ),
    )(x_in, wmat, bmat)

    # (N*D, kd, H, kh, W, kw*Cout+co) -> (N, 2D, 2H, 2W, Cout): free bitcast reshape.
    return out6.reshape(n, 2 * d, 2 * h, 2 * w, cout)


def upsampling_deconv_block(x, wmat, bmat, *, out_dtype=None, th=None):
    """PyTorch-layout parity wrapper: NCDHW in -> NCDHW out (boundary transposes only).

    In a channels-last model use upsampling_deconv_block_ndhwc directly (no transposes).
    """
    y = upsampling_deconv_block_ndhwc(jnp.transpose(x, (0, 2, 3, 4, 1)), wmat, bmat,
                                      out_dtype=out_dtype, th=th)
    return jnp.transpose(y, (0, 4, 1, 2, 3))


# ---------------------------------------------------------------------------------------------
# Pure-JAX reference
# ---------------------------------------------------------------------------------------------
def _reference_ndhwc(x, weight, bias):
    """ConvTranspose3d(k=2, s=2, p=0) + ReLU, channels-last."""
    n, d, h, w, cin = x.shape
    cout = weight.shape[1]
    y = jnp.einsum('ndhwi,ioabc->ndahbwco', x, weight) + bias
    y = jnp.maximum(y, 0.0)
    return y.reshape(n, 2 * d, 2 * h, 2 * w, cout)


if __name__ == "__main__":
    key = jax.random.PRNGKey(0)
    k1, k2, k3, k4, k5, k6 = jax.random.split(key, 6)

    def make_params(k, cin, cout):
        kw_, kb_ = jax.random.split(k)
        bound = float(1.0 / (cin * 8) ** 0.5)
        wgt = jax.random.uniform(kw_, (cin, cout, 2, 2, 2), jnp.float32, -bound, bound)
        b = jax.random.uniform(kb_, (cout,), jnp.float32, -bound, bound)
        return wgt, b

    # --- Config 1: real AN block_eight_up channels (Cin=32 -> Cout=16), f32.
    #     Grid = (N*D=16, 1) parallel steps; packed params reused for both layouts.
    N, Cin, Cout, D, H, W = 2, 32, 16, 8, 8, 8
    x_cl = jax.random.normal(k1, (N, D, H, W, Cin), dtype=jnp.float32)
    w1, b1 = make_params(k2, Cin, Cout)
    wm1, bm1 = pack_deconv_params(w1, b1)                      # packed once

    out_cl = jax.block_until_ready(upsampling_deconv_block_ndhwc(x_cl, wm1, bm1))
    ref_cl = _reference_ndhwc(x_cl, w1, b1)
    assert out_cl.shape == (N, 2 * D, 2 * H, 2 * W, Cout)
    assert jnp.allclose(out_cl, ref_cl, atol=1e-3, rtol=1e-3), "NDHWC mismatch vs reference"

    x_pt = jnp.transpose(x_cl, (0, 4, 1, 2, 3))
    out_pt = jax.block_until_ready(upsampling_deconv_block(x_pt, wm1, bm1))
    ref_pt = jnp.transpose(ref_cl, (0, 4, 1, 2, 3))
    assert out_pt.shape == (N, Cout, 2 * D, 2 * H, 2 * W)
    assert jnp.allclose(out_pt, ref_pt, atol=1e-3, rtol=1e-3), "NCDHW mismatch vs reference"

    # --- Config 2: bf16 operands + bf16 output (review opt #2), explicit th=8 on H=12 so the
    #     last h-tile is ragged (exercises Pallas partial-block masking).
    N2, Cin2, Cout2, D2, H2, W2 = 1, 16, 8, 4, 12, 8
    x2 = jax.random.normal(k3, (N2, D2, H2, W2, Cin2), dtype=jnp.float32)
    w2, b2 = make_params(k4, Cin2, Cout2)
    wm2, bm2 = pack_deconv_params(w2, b2, dtype=jnp.bfloat16)
    out2 = jax.block_until_ready(
        upsampling_deconv_block_ndhwc(x2.astype(jnp.bfloat16), wm2, bm2,
                                      out_dtype=jnp.bfloat16, th=8))
    ref2 = _reference_ndhwc(x2, w2, b2)
    assert out2.shape == (N2, 2 * D2, 2 * H2, 2 * W2, Cout2)
    assert jnp.allclose(out2.astype(jnp.float32), ref2, atol=2e-2, rtol=5e-2), \
        "bf16 / ragged-tile mismatch vs reference"

    # --- Config 3: W not a multiple of 8 -> generic one-row-per-step path, f32.
    N3, Cin3, Cout3, D3, H3, W3 = 1, 8, 16, 2, 3, 6
    x3 = jax.random.normal(k5, (N3, D3, H3, W3, Cin3), dtype=jnp.float32)
    w3, b3 = make_params(k6, Cin3, Cout3)
    wm3, bm3 = pack_deconv_params(w3, b3)
    out3 = jax.block_until_ready(upsampling_deconv_block_ndhwc(x3, wm3, bm3))
    ref3 = _reference_ndhwc(x3, w3, b3)
    assert out3.shape == (N3, 2 * D3, 2 * H3, 2 * W3, Cout3)
    assert jnp.allclose(out3, ref3, atol=1e-3, rtol=1e-3), "odd-W mismatch vs reference"

    print("KERNEL_OK")
</pallas_src>

<mosaic_0001>
module attributes {stable_mosaic.version = 11 : i64} {
  func.func @_deconv_fused_kernel(%arg0: i32, %arg1: i32, %arg2: memref<1x64x32xf32, #tpu.memory_space<vmem>>, %arg3: memref<32x128xf32, #tpu.memory_space<vmem>>, %arg4: memref<1x128xf32, #tpu.memory_space<vmem>>, %arg5: memref<1x2x8x2x8x32xf32, #tpu.memory_space<vmem>>) attributes {dimension_semantics = [#tpu.dimension_semantics<parallel>, #tpu.dimension_semantics<parallel>], iteration_bounds = array<i64: 16, 1>, scalar_prefetch = 0 : i64, scratch_operands = 0 : i64, tpu.core_type = #tpu.core_type<tc>, window_params = [{transform_indices = @transform_0, window_bounds = array<i64: 1, 64, 32>}, {pipeline_mode = #tpu.pipeline_mode<synchronous>, transform_indices = @transform_1, window_bounds = array<i64: 32, 128>}, {pipeline_mode = #tpu.pipeline_mode<synchronous>, transform_indices = @transform_2, window_bounds = array<i64: 1, 128>}, {transform_indices = @transform_3, window_bounds = array<i64: 1, 2, 8, 2, 8, 32>}]} {
    %c0 = arith.constant 0 : index
    %c0_0 = arith.constant 0 : index
    %c0_1 = arith.constant 0 : index
    %0 = vector.load %arg2[%c0, %c0_0, %c0_1] : memref<1x64x32xf32, #tpu.memory_space<vmem>>, vector<1x64x32xf32>
    %1 = vector.shape_cast %0 : vector<1x64x32xf32> to vector<64x32xf32>
    %c0_2 = arith.constant 0 : index
    %c0_3 = arith.constant 0 : index
    %2 = vector.load %arg3[%c0_2, %c0_3] : memref<32x128xf32, #tpu.memory_space<vmem>>, vector<32x128xf32>
    %cst = arith.constant dense<0.000000e+00> : vector<64x128xf32>
    %3 = tpu.matmul %1, %2, %cst {dimension_numbers = #tpu.dot_dimension_numbers<[1], [0], [0], [1], [0, 0, 1, 1], [], []>} : vector<64x32xf32>, vector<32x128xf32>, vector<64x128xf32> -> vector<64x128xf32>
    %c0_4 = arith.constant 0 : index
    %c0_5 = arith.constant 0 : index
    %4 = vector.load %arg4[%c0_4, %c0_5] : memref<1x128xf32, #tpu.memory_space<vmem>>, vector<1x128xf32>
    %5 = vector.broadcast %4 : vector<1x128xf32> to vector<64x128xf32>
    %6 = arith.addf %3, %5 : vector<64x128xf32>
    %cst_6 = arith.constant 0.000000e+00 : f32
    %7 = vector.broadcast %cst_6 : f32 to vector<64x128xf32>
    %8 = arith.maximumf %6, %7 : vector<64x128xf32>
    %9 = vector.shape_cast %8 : vector<64x128xf32> to vector<8x8x128xf32>
    %10 = vector.extract_strided_slice %9 {offsets = [0, 0, 0], sizes = [8, 8, 32], strides = [1, 1, 1]} : vector<8x8x128xf32> to vector<8x8x32xf32>
    %c0_7 = arith.constant 0 : index
    %c0_8 = arith.constant 0 : index
    %c0_9 = arith.constant 0 : index
    %c0_10 = arith.constant 0 : index
    %c0_11 = arith.constant 0 : index
    %c0_12 = arith.constant 0 : index
    %11 = vector.load %arg5[%c0_7, %c0_8, %c0_9, %c0_10, %c0_11, %c0_12] : memref<1x2x8x2x8x32xf32, #tpu.memory_space<vmem>>, vector<1x1x8x1x8x32xf32>
    %12 = vector.shape_cast %11 : vector<1x1x8x1x8x32xf32> to vector<8x8x32xf32>
    %13 = vector.shape_cast %10 : vector<8x8x32xf32> to vector<1x1x8x1x8x32xf32>
    tpu.vector_store %arg5[%c0_7, %c0_8, %c0_9, %c0_10, %c0_11, %c0_12], %13 {strides = array<i32>} : memref<1x2x8x2x8x32xf32, #tpu.memory_space<vmem>>, vector<1x1x8x1x8x32xf32>,
    %14 = vector.extract_strided_slice %9 {offsets = [0, 0, 32], sizes = [8, 8, 32], strides = [1, 1, 1]} : vector<8x8x128xf32> to vector<8x8x32xf32>
    %c0_13 = arith.constant 0 : index
    %c0_14 = arith.constant 0 : index
    %c0_15 = arith.constant 0 : index
    %c1 = arith.constant 1 : index
    %c0_16 = arith.constant 0 : index
    %c0_17 = arith.constant 0 : index
    %15 = vector.load %arg5[%c0_13, %c0_14, %c0_15, %c1, %c0_16, %c0_17] : memref<1x2x8x2x8x32xf32, #tpu.memory_space<vmem>>, vector<1x1x8x1x8x32xf32>
    %16 = vector.shape_cast %15 : vector<1x1x8x1x8x32xf32> to vector<8x8x32xf32>
    %17 = vector.shape_cast %14 : vector<8x8x32xf32> to vector<1x1x8x1x8x32xf32>
    tpu.vector_store %arg5[%c0_13, %c0_14, %c0_15, %c1, %c0_16, %c0_17], %17 {strides = array<i32>} : memref<1x2x8x2x8x32xf32, #tpu.memory_space<vmem>>, vector<1x1x8x1x8x32xf32>,
    %18 = vector.extract_strided_slice %9 {offsets = [0, 0, 64], sizes = [8, 8, 32], strides = [1, 1, 1]} : vector<8x8x128xf32> to vector<8x8x32xf32>
    %c0_18 = arith.constant 0 : index
    %c1_19 = arith.constant 1 : index
    %c0_20 = arith.constant 0 : index
    %c0_21 = arith.constant 0 : index
    %c0_22 = arith.constant 0 : index
    %c0_23 = arith.constant 0 : index
    %19 = vector.load %arg5[%c0_18, %c1_19, %c0_20, %c0_21, %c0_22, %c0_23] : memref<1x2x8x2x8x32xf32, #tpu.memory_space<vmem>>, vector<1x1x8x1x8x32xf32>
    %20 = vector.shape_cast %19 : vector<1x1x8x1x8x32xf32> to vector<8x8x32xf32>
    %21 = vector.shape_cast %18 : vector<8x8x32xf32> to vector<1x1x8x1x8x32xf32>
    tpu.vector_store %arg5[%c0_18, %c1_19, %c0_20, %c0_21, %c0_22, %c0_23], %21 {strides = array<i32>} : memref<1x2x8x2x8x32xf32, #tpu.memory_space<vmem>>, vector<1x1x8x1x8x32xf32>,
    %22 = vector.extract_strided_slice %9 {offsets = [0, 0, 96], sizes = [8, 8, 32], strides = [1, 1, 1]} : vector<8x8x128xf32> to vector<8x8x32xf32>
    %c0_24 = arith.constant 0 : index
    %c1_25 = arith.constant 1 : index
    %c0_26 = arith.constant 0 : index
    %c1_27 = arith.constant 1 : index
    %c0_28 = arith.constant 0 : index
    %c0_29 = arith.constant 0 : index
    %23 = vector.load %arg5[%c0_24, %c1_25, %c0_26, %c1_27, %c0_28, %c0_29] : memref<1x2x8x2x8x32xf32, #tpu.memory_space<vmem>>, vector<1x1x8x1x8x32xf32>
    %24 = vector.shape_cast %23 : vector<1x1x8x1x8x32xf32> to vector<8x8x32xf32>
    %25 = vector.shape_cast %22 : vector<8x8x32xf32> to vector<1x1x8x1x8x32xf32>
    tpu.vector_store %arg5[%c0_24, %c1_25, %c0_26, %c1_27, %c0_28, %c0_29], %25 {strides = array<i32>} : memref<1x2x8x2x8x32xf32, #tpu.memory_space<vmem>>, vector<1x1x8x1x8x32xf32>,
    return
  }
  func.func @transform_0(%arg0: i32, %arg1: i32) -> (i32, i32, i32) {
    %c0_i32 = arith.constant 0 : i32
    %c0_i32_0 = arith.constant 0 : i32
    return %arg0, %arg1, %c0_i32 : i32, i32, i32
  }
  func.func @transform_1(%arg0: i32, %arg1: i32) -> (i32, i32) {
    %c0_i32 = arith.constant 0 : i32
    %c0_i32_0 = arith.constant 0 : i32
    %c0_i32_1 = arith.constant 0 : i32
    return %c0_i32, %c0_i32_0 : i32, i32
  }
  func.func @transform_2(%arg0: i32, %arg1: i32) -> (i32, i32) {
    %c0_i32 = arith.constant 0 : i32
    %c0_i32_0 = arith.constant 0 : i32
    %c0_i32_1 = arith.constant 0 : i32
    return %c0_i32, %c0_i32_0 : i32, i32
  }
  func.func @transform_3(%arg0: i32, %arg1: i32) -> (i32, i32, i32, i32, i32, i32) {
    %c0_i32 = arith.constant 0 : i32
    %c0_i32_0 = arith.constant 0 : i32
    %c0_i32_1 = arith.constant 0 : i32
    %c0_i32_2 = arith.constant 0 : i32
    %c0_i32_3 = arith.constant 0 : i32
    return %arg0, %c0_i32, %arg1, %c0_i32_0, %c0_i32_1, %c0_i32_2 : i32, i32, i32, i32, i32, i32
  }
}

</mosaic_0001>

<llo_original>
// kernel: tpu_custom_call.1
$region0: #{tpu_custom_call.1}
  #allocation0 [shape = 'u32[]', space=smem, size = 0x4, offset = 0x4, fixed_abs, tag = 'smem constant byte address 0x4 - core index']
  #allocation1 [shape = 'u32[144,128]{1,0:T(1,128)}', space=vmem, size = 0x12000, scoped, tag = 'internal scratch']
  %s0 = inlined_call_operand.vmem [shape: f32[16,64,32], index: 0, kind: input, shape index: {}]
  %s1 = inlined_call_operand.hbm [shape: f32[32,128], index: 1, kind: input, shape index: {}]
  %s2 = inlined_call_operand.hbm [shape: f32[1,128], index: 2, kind: input, shape index: {}]
  %s3 = inlined_call_operand.hbm [shape: f32[16,2,8,2,8,32], index: 3, kind: output, shape index: {}]
  %s4 = sld [smem:[#allocation0]]
  $region53: #{tpu_custom_call.1} parent=0
    _
  %s6 = ssub.s32 1, %s4
  %s7 = scalar_select 0, %s6, %s4
  $region1: #{tpu_custom_call.1} parent=0
    #allocation2 [shape = 'u8[16384]{0}', space=vmem, size = 0x4000, scoped, tag = 'input window, operand 1, single buffered']
    #allocation3 [shape = 's32[2]{0}', space=sflag, size = 0x8, scoped, tag = 'scoped memory for tpu_custom_call.1']
    #allocation4 [shape = 's32[2]{0}', space=sflag, size = 0x8, scoped, tag = 'scoped memory for tpu_custom_call.1']
    #allocation5 [shape = 'u8[512]{0}', space=vmem, size = 0x400, scoped, tag = 'input window, operand 2, single buffered']
    #allocation6 [shape = 's32[1]{0}', space=sflag, size = 0x4, scoped, tag = 'scoped memory for tpu_custom_call.1']
    #allocation7 [shape = 'u8[262144]{0}', space=vmem, size = 0x40000, scoped, tag = 'output window, operand 0']
    %8 = vsyncpa [#allocation3], 0
    %9 = vsyncpa [#allocation6], 0
    %10 = vsyncpa [#allocation4], 0
    %s11 = scalar_lea.sflag [#allocation4], 1
    %12 = vsyncpa %s11, 0
    loop: start=0, step=1, limit=18
    $region2: #{tpu_custom_call.1} parent=1 // loop_pre_header
      _
    $region3: #{tpu_custom_call.1} parent=1 // loop_header
      %s14 = sphi 0, %s18
      %p15 = scmp.ge.s32.totalorder %s14, 18
      %s21 = sphi 0, %s33
      %s22 = sphi 0, %s29
      %s23 = sphi 0, %s21
      %s24 = sphi 0, %s22
      %s25 = sphi 0, %s23
      %s26 = sphi 0, %s24
      %s38 = sphi 0, %s40
      %s41 = sphi 0, %s38
      %s42 = sphi 0, %s41
      %s58 = sphi 0, %s42
      %s62 = sphi 0, %s62
      %s64 = sphi 0, %s62
      %s65 = sphi 0, %s64
      %s79 = sphi 0, %s65
      %s83 = sphi 0, %s83
      %s85 = sphi 0, %s83
      %s86 = sphi 0, %s85
      %s100 = sphi 0, %s86
      %s108 = sphi 0, %s110
      %s111 = sphi 0, %s108
      %s112 = sphi 0, %s111
      %s128 = sphi 0, %s112
    $region4: #{tpu_custom_call.1} parent=1 // loop_header_branch
      %17 = sbr.rel (%p15) target = $region8
    $region5: #{tpu_custom_call.1} parent=1 // loop_body
      %s19 = ssub.s32 %s14, 1
      %s20 = ssub.s32 %s14, 2
      %s27 = sadd.s32 1, %s22
      %p28 = scmp.ge.s32.totalorder %s27, 1
      %s29 = scalar_select %p28, 0, %s27
      %s30 = sadd.s32 1, %s21
      %s31 = scalar_select %p28, %s30, %s21
      %p32 = scmp.ge.s32.totalorder %s31, 16
      %s33 = scalar_select %p32, 0, %s31
      %s34 = ssub.s32 %s21, %s33
      %s35 = ssub.s32 %s22, %s29
      %s36 = sor.u32 %s34, %s35
      %p37 = scmp.eq.s32.totalorder %s36, 0
      %s39 = sadd.s32 %s38, 1
      %s40 = scalar_select %p37, %s38, %s39
      %p43 = pneg %p37
      %p44 = scmp.eq.s32.totalorder %s14, 15
      %p45 = por %p43, %p44
      %p46 = scmp.ne.s32.totalorder %s38, %s41
      %p47 = scmp.eq.s32.totalorder %s14, 0
      %p48 = por %p46, %p47
      %p49 = scmp.ne.s32.totalorder %s38, %s41
      %p50 = scmp.eq.s32.totalorder %s19, 15
      %p51 = por %p49, %p50
      %p52 = scmp.ne.s32.totalorder %s41, %s42
      %p53 = scmp.eq.s32.totalorder %s19, 0
      %p54 = por %p52, %p53
      %p55 = scmp.ne.s32.totalorder %s41, %s42
      %p56 = scmp.eq.s32.totalorder %s20, 15
      %p57 = por %p55, %p56
      %p59 = scmp.ne.s32.totalorder %s42, %s58
      %p60 = scmp.eq.s32.totalorder %s20, 0
      %p61 = por %p59, %p60
      %s63 = sadd.s32 %s62, 1
      %p66 = scmp.eq.s32.totalorder %s14, 15
      %p67 = scmp.ne.s32.totalorder %s62, %s64
      %p68 = scmp.eq.s32.totalorder %s14, 0
      %p69 = por %p67, %p68
      %p70 = scmp.ne.s32.totalorder %s62, %s64
      %p71 = scmp.eq.s32.totalorder %s19, 15
      %p72 = por %p70, %p71
      %p73 = scmp.ne.s32.totalorder %s64, %s65
      %p74 = scmp.eq.s32.totalorder %s19, 0
      %p75 = por %p73, %p74
      %p76 = scmp.ne.s32.totalorder %s64, %s65
      %p77 = scmp.eq.s32.totalorder %s20, 15
      %p78 = por %p76, %p77
      %p80 = scmp.ne.s32.totalorder %s65, %s79
      %p81 = scmp.eq.s32.totalorder %s20, 0
      %p82 = por %p80, %p81
      %s84 = sadd.s32 %s83, 1
      %p87 = scmp.eq.s32.totalorder %s14, 15
      %p88 = scmp.ne.s32.totalorder %s83, %s85
      %p89 = scmp.eq.s32.totalorder %s14, 0
      %p90 = por %p88, %p89
      %p91 = scmp.ne.s32.totalorder %s83, %s85
      %p92 = scmp.eq.s32.totalorder %s19, 15
      %p93 = por %p91, %p92
      %p94 = scmp.ne.s32.totalorder %s85, %s86
      %p95 = scmp.eq.s32.totalorder %s19, 0
      %p96 = por %p94, %p95
      %p97 = scmp.ne.s32.totalorder %s85, %s86
      %p98 = scmp.eq.s32.totalorder %s20, 15
      %p99 = por %p97, %p98
      %p101 = scmp.ne.s32.totalorder %s86, %s100
      %p102 = scmp.eq.s32.totalorder %s20, 0
      %p103 = por %p101, %p102
      %s104 = ssub.s32 %s21, %s33
      %s105 = ssub.s32 %s22, %s29
      %s106 = sor.u32 %s104, %s105
      %p107 = scmp.eq.s32.totalorder %s106, 0
      %s109 = sadd.s32 %s108, 1
      %s110 = scalar_select %p107, %s108, %s109
      %p113 = pneg %p107
      %p114 = scmp.eq.s32.totalorder %s14, 15
      %p115 = por %p113, %p114
      %p116 = scmp.ne.s32.totalorder %s108, %s111
      %p117 = scmp.eq.s32.totalorder %s14, 0
      %p118 = por %p116, %p117
      %p119 = scmp.ne.s32.totalorder %s108, %s111
      %p120 = scmp.eq.s32.totalorder %s19, 15
      %p121 = por %p119, %p120
      %p122 = scmp.ne.s32.totalorder %s111, %s112
      %p123 = scmp.eq.s32.totalorder %s19, 0
      %p124 = por %p122, %p123
      %p125 = scmp.ne.s32.totalorder %s111, %s112
      %p126 = scmp.eq.s32.totalorder %s20, 15
      %p127 = por %p125, %p126
      %p129 = scmp.ne.s32.totalorder %s112, %s128
      %p130 = scmp.eq.s32.totalorder %s20, 0
      %p131 = por %p129, %p130
      %p132 = scmp.le.s32.totalorder 1, %s14
      %p133 = scmp.lt.s32.totalorder %s14, 17
      %p134 = pnand %p132, %p133
      %p135 = pneg %p134
      // Predicated region
      $region9: #{tpu_custom_call.1} parent=5 // pred_check
        _
      $region10: #{tpu_custom_call.1} parent=5 // pred_check_branch
        %137 = sbr.rel (%p134) target = $region12
      $region11: #{tpu_custom_call.1} parent=5 // pred_region
        %s138 = ssub.s32 %s14, 1
        // Predicated region
        $region13: #{tpu_custom_call.1} parent=11 // pred_check
          %p139 = pneg %p75
        $region14: #{tpu_custom_call.1} parent=11 // pred_check_branch
          %141 = sbr.rel (%p139) target = $region16
        $region15: #{tpu_custom_call.1} parent=11 // pred_region
          %s143 = ssub.s32 512, 512
          %144 = vsyncadd [#allocation3], %s143
          %s145 = sshll.u32 [#allocation2], 4
          %s146 = int_to_ptr.vmem [resolvable:$true] %s145
          %151 = dma.hbm_to_vmem [thread:$0]  %s1, 512, %s146, [#allocation3], 128, 128, 8
        $region16: #{tpu_custom_call.1} parent=11 // pred_fallthru
          _
        // Predicated region
        $region17: #{tpu_custom_call.1} parent=11 // pred_check
          %p152 = pneg %p96
        $region18: #{tpu_custom_call.1} parent=11 // pred_check_branch
          %154 = sbr.rel (%p152) target = $region20
        $region19: #{tpu_custom_call.1} parent=11 // pred_region
          %s156 = ssub.s32 16, 16
          %157 = vsyncadd [#allocation6], %s156
          %s159 = sshll.u32 [#allocation5], 4
          %s160 = int_to_ptr.vmem [resolvable:$true] %s159
          %162 = dma.hbm_to_vmem [thread:$0]  %s2, 16, %s160, [#allocation6]
        $region20: #{tpu_custom_call.1} parent=11 // pred_fallthru
          _
      $region12: #{tpu_custom_call.1} parent=5 // pred_fallthru
        _
      %p163 = scmp.lt.s32.totalorder %s14, 16
      // Predicated region
      $region21: #{tpu_custom_call.1} parent=5 // pred_check
        %p164 = pneg %p163
      $region22: #{tpu_custom_call.1} parent=5 // pred_check_branch
        %166 = sbr.rel (%p164) target = $region24
      $region23: #{tpu_custom_call.1} parent=5 // pred_region
        // Predicated region
        $region25: #{tpu_custom_call.1} parent=23 // pred_check
          %p167 = pneg %p48
        $region26: #{tpu_custom_call.1} parent=23 // pred_check_branch
          %169 = sbr.rel (%p167) target = $region28
        $region27: #{tpu_custom_call.1} parent=23 // pred_region
          %s170 = smul.u32 8, %s22
          %p171 = scmp.lt.s32.totalorder %s21, 15
          %s172 = scalar_select %p171, %s21, 15
          %p173 = scmp.lt.s32.totalorder %s170, 7
          %s174 = scalar_select %p173, %s170, 7
          %s175 = smul.addr %s172, 8
          %s176 = sadd.s32 %s174, %s175
          %s177 = smul.addr %s176, 8
          %s178 = scalar_lea.vmem %s0, %s177
          %s179 = smul.u32 8, %s22
        $region28: #{tpu_custom_call.1} parent=23 // pred_fallthru
          _
      $region24: #{tpu_custom_call.1} parent=5 // pred_fallthru
        _
      %p180 = scmp.le.s32.totalorder 1, %s14
      %p181 = scmp.lt.s32.totalorder %s14, 17
      %p182 = pnand %p180, %p181
      %p183 = pneg %p182
      // Predicated region
      $region29: #{tpu_custom_call.1} parent=5 // pred_check
        _
      $region30: #{tpu_custom_call.1} parent=5 // pred_check_branch
        %185 = sbr.rel (%p182) target = $region32
      $region31: #{tpu_custom_call.1} parent=5 // pred_region
        %s186 = ssub.s32 %s14, 1
        // Predicated region
        $region33: #{tpu_custom_call.1} parent=31 // pred_check
          %p187 = pneg %p75
        $region34: #{tpu_custom_call.1} parent=31 // pred_check_branch
          %189 = sbr.rel (%p187) target = $region36
        $region35: #{tpu_custom_call.1} parent=31 // pred_region
          %190 = dma.done [#allocation3], 512
        $region36: #{tpu_custom_call.1} parent=31 // pred_fallthru
          _
        // Predicated region
        $region37: #{tpu_custom_call.1} parent=31 // pred_check
          %p191 = pneg %p96
        $region38: #{tpu_custom_call.1} parent=31 // pred_check_branch
          %193 = sbr.rel (%p191) target = $region40
        $region39: #{tpu_custom_call.1} parent=31 // pred_region
          %194 = dma.done [#allocation6], 16
        $region40: #{tpu_custom_call.1} parent=31 // pred_fallthru
          _
        %s195 = smul.u32 8, %s24
        %p196 = scmp.lt.s32.totalorder %s23, 15
        %s197 = scalar_select %p196, %s23, 15
        %p198 = scmp.lt.s32.totalorder %s195, 7
        %s199 = scalar_select %p198, %s195, 7
        %s200 = smul.addr %s197, 8
        %s201 = sadd.s32 %s199, %s200
        %s202 = smul.addr %s201, 8
        %s203 = scalar_lea.vmem %s0, %s202
        %p204 = pneg %p54
        %p205 = pneg %p51
        %p206 = pneg %p75
        %p207 = pneg %p72
        %p208 = pneg %p96
        %p209 = pneg %p93
        %p210 = pneg %p124
        %p211 = pneg %p121
        %s212 = sand.u32 %s111, 1
        %s213 = scalar_lea.sflag [#allocation4], %s212
        %s214 = sand.u32 %s111, 1
        %s215 = smul.addr %s214, 256
        %s216 = scalar_lea.vmem [#allocation7], %s215
        %s217 = smul.u32 8, %s24
        %p218 = scmp.lt.s32.totalorder %s23, 15
        %s219 = scalar_select %p218, %s23, 15
        %p220 = scmp.lt.s32.totalorder %s217, 7
        %s221 = scalar_select %p220, %s217, 7
        %s222 = smul.addr %s219, 8
        %s223 = sadd.s32 %s221, %s222
        %s224 = smul.addr %s223, 8
        %s225 = scalar_lea.vmem %s0, %s224
        %s226 = smul.u32 8, %s24
        %s227 = smul.u32 8, %s24
        %v228 = vld [vmem:[%s225] sm:$0xff]
        %v229 = vld [vmem:[%s225 + $0x8] sm:$0xff]
        %v230 = vld [vmem:[%s225 + $0x10] sm:$0xff]
        %v231 = vld [vmem:[%s225 + $0x18] sm:$0xff]
        %v232 = vld [vmem:[%s225 + $0x20] sm:$0xff]
        %v233 = vld [vmem:[%s225 + $0x28] sm:$0xff]
        %v234 = vld [vmem:[%s225 + $0x30] sm:$0xff]
        %v235 = vld [vmem:[%s225 + $0x38] sm:$0xff]
        %v236 = vld [vmem:[#allocation2] sm:$0xff]
        %v237 = vld [vmem:[#allocation2 + $0x8] sm:$0xff]
        %v238 = vld [vmem:[#allocation2 + $0x10] sm:$0xff]
        %v239 = vld [vmem:[#allocation2 + $0x18] sm:$0xff]
        %v240 = vld [vmem:[#allocation5] sm:$0x1]
        %v242 = vlaneseq
        %v243 = vshrl.u32 %v242, 7
        %v244 = vsub.s32 0, %v243
        %v245 = vrot.slane %v240, %v244
        %vm247 = vcmask 261120
        %v249 = vsel %vm247, %v228, 0
        %v252 = vsel %vm247, %v229, 0
        %v255 = vsel %vm247, %v230, 0
        %v258 = vsel %vm247, %v231, 0
        %v261 = vsel %vm247, %v232, 0
        %v264 = vsel %vm247, %v233, 0
        %v267 = vsel %vm247, %v234, 0
        %v270 = vsel %vm247, %v235, 0
        %272 = vmatprep.subr.mxu0 0.0
        %273 = vmatpush1.msra.mxu0 0.0
        %274 = vmatprep.subr.mxu0 0.0
        %275 = vmatpush1.msra.mxu0 0.0
        %276 = vmatprep.subr.mxu0 0.0
        %277 = vmatpush1.msra.mxu0 0.0
        %278 = vmatprep.subr.mxu0 0.0
        %279 = vmatpush1.msra.mxu0 0.0
        %280 = vmatprep.subr.mxu0 0.0
        %281 = vmatpush1.msra.mxu0 0.0
        %282 = vmatprep.subr.mxu0 0.0
        %283 = vmatpush1.msra.mxu0 0.0
        %284 = vmatprep.subr.mxu0 0.0
        %285 = vmatpush1.msra.mxu0 0.0
        %286 = vmatprep.subr.mxu0 0.0
        %287 = vmatpush1.msra.mxu0 0.0
        %288 = vmatprep.subr.mxu0 0.0
        %289 = vmatpush1.msra.mxu0 0.0
        %290 = vmatprep.subr.mxu0 0.0
        %291 = vmatpush1.msra.mxu0 0.0
        %292 = vmatprep.subr.mxu0 0.0
        %293 = vmatpush1.msra.mxu0 0.0
        %294 = vmatprep.subr.mxu0 0.0
        %295 = vmatpush1.msra.mxu0 0.0
        %296 = vmatprep.subr.mxu0 0.0
        %297 = vmatpush1.msra.mxu0 %v239
        %298 = vmatprep.subr.mxu0 0.0
        %299 = vmatpush1.msra.mxu0 %v238
        %300 = vmatprep.subr.mxu0 0.0
        %301 = vmatpush1.msra.mxu0 %v237
        %302 = vmatprep.subr.mxu0 0.0
        %303 = vmatpush1.msra.mxu0 %v236
        %304 = vmatprep.subr.mxu0 0.0
        %305 = vmatpush2.msra.mxu0 0.0
        %306 = vmatprep.subr.mxu0 0.0
        %307 = vmatpush2.msra.mxu0 0.0
        %308 = vmatprep.subr.mxu0 0.0
        %309 = vmatpush2.msra.mxu0 0.0
        %310 = vmatprep.subr.mxu0 0.0
        %311 = vmatpush2.msra.mxu0 0.0
        %312 = vmatprep.subr.mxu0 0.0
        %313 = vmatpush2.msra.mxu0 0.0
        %314 = vmatprep.subr.mxu0 0.0
        %315 = vmatpush2.msra.mxu0 0.0
        %316 = vmatprep.subr.mxu0 0.0
        %317 = vmatpush2.msra.mxu0 0.0
        %318 = vmatprep.subr.mxu0 0.0
        %319 = vmatpush2.msra.mxu0 0.0
        %320 = vmatprep.subr.mxu0 0.0
        %321 = vmatpush2.msra.mxu0 0.0
        %322 = vmatprep.subr.mxu0 0.0
        %323 = vmatpush2.msra.mxu0 0.0
        %324 = vmatprep.subr.mxu0 0.0
        %325 = vmatpush2.msra.mxu0 0.0
        %326 = vmatprep.subr.mxu0 0.0
        %327 = vmatpush2.msra.mxu0 0.0
        %328 = vmatprep.subr.mxu0 0.0
        %329 = vmatpush2.msra.mxu0 0.0
        %330 = vmatprep.subr.mxu0 0.0
        %331 = vmatpush2.msra.mxu0 0.0
        %332 = vmatprep.subr.mxu0 0.0
        %333 = vmatpush2.msra.mxu0 0.0
        %334 = vmatprep.subr.mxu0 0.0
        %335 = vmatpush2.msra.mxu0 0.0
        %336 = vmatprep.mubr.f32.mxu0 0.0
        %337 = vmatmul.mubr.f32.gmra.mxu0 %v249
        %v338 = vpop.f32.mrf.mxu0
        %v339 = vadd.f32 %v245, %v338
        %v340 = vpop.f32.mrf.mxu0
        %341 = vmatprep.mubr.f32.mxu0 0.0
        %342 = vmatmul.mubr.f32.gmra.mxu0 %v252
        %v343 = vpop.f32.mrf.mxu0
        %v344 = vadd.f32 %v245, %v343
        %v345 = vpop.f32.mrf.mxu0
        %346 = vmatprep.mubr.f32.mxu0 0.0
        %347 = vmatmul.mubr.f32.gmra.mxu0 %v255
        %v348 = vpop.f32.mrf.mxu0
        %v349 = vadd.f32 %v245, %v348
        %v350 = vpop.f32.mrf.mxu0
        %351 = vmatprep.mubr.f32.mxu0 0.0
        %352 = vmatmul.mubr.f32.gmra.mxu0 %v258
        %v353 = vpop.f32.mrf.mxu0
        %v354 = vadd.f32 %v245, %v353
        %v355 = vpop.f32.mrf.mxu0
        %356 = vmatprep.mubr.f32.mxu0 0.0
        %357 = vmatmul.mubr.f32.gmra.mxu0 %v261
        %v358 = vpop.f32.mrf.mxu0
        %v359 = vadd.f32 %v245, %v358
        %v360 = vpop.f32.mrf.mxu0
        %361 = vmatprep.mubr.f32.mxu0 0.0
        %362 = vmatmul.mubr.f32.gmra.mxu0 %v264
        %v363 = vpop.f32.mrf.mxu0
        %v364 = vadd.f32 %v245, %v363
        %v365 = vpop.f32.mrf.mxu0
        %366 = vmatprep.mubr.f32.mxu0 0.0
        %367 = vmatmul.mubr.f32.gmra.mxu0 %v267
        %v368 = vpop.f32.mrf.mxu0
        %v369 = vadd.f32 %v245, %v368
        %v370 = vpop.f32.mrf.mxu0
        %371 = vmatprep.mubr.f32.mxu0 0.0
        %372 = vmatmul.mubr.f32.gmra.mxu0 %v270
        %v373 = vpop.f32.mrf.mxu0
        %v374 = vadd.f32 %v245, %v373
        %v375 = vpop.f32.mrf.mxu0
        %376 = vdwg.mxu0
        %v377 = vmax.f32 %v339, 0.0
        %v378 = vmax.f32 %v344, 0.0
        %v379 = vmax.f32 %v349, 0.0
        %v380 = vmax.f32 %v354, 0.0
        %v381 = vmax.f32 %v359, 0.0
        %v382 = vmax.f32 %v364, 0.0
        %v383 = vmax.f32 %v369, 0.0
        %v384 = vmax.f32 %v374, 0.0
        %385 = vst.msk [vmem:[%s216] sm:$0xff] %vm247, %v377
        %386 = vst.msk [vmem:[%s216 + $0x10] sm:$0xff] %vm247, %v378
        %387 = vst.msk [vmem:[%s216 + $0x20] sm:$0xff] %vm247, %v379
        %388 = vst.msk [vmem:[%s216 + $0x30] sm:$0xff] %vm247, %v380
        %389 = vst.msk [vmem:[%s216 + $0x40] sm:$0xff] %vm247, %v381
        %390 = vst.msk [vmem:[%s216 + $0x50] sm:$0xff] %vm247, %v382
        %391 = vst.msk [vmem:[%s216 + $0x60] sm:$0xff] %vm247, %v383
        %392 = vst.msk [vmem:[%s216 + $0x70] sm:$0xff] %vm247, %v384
        %401 = vrot.lane.b32.xlu0 %v377, 96
        %v402 = vpop.permute.xlu0 %401
        %403 = vrot.lane.b32.xlu0 %v378, 96
        %v404 = vpop.permute.xlu0 %403
        %405 = vrot.lane.b32.xlu0 %v379, 96
        %v406 = vpop.permute.xlu0 %405
        %407 = vrot.lane.b32.xlu0 %v380, 96
        %v408 = vpop.permute.xlu0 %407
        %409 = vrot.lane.b32.xlu0 %v381, 96
        %v410 = vpop.permute.xlu0 %409
        %411 = vrot.lane.b32.xlu0 %v382, 96
        %v412 = vpop.permute.xlu0 %411
        %413 = vrot.lane.b32.xlu0 %v383, 96
        %v414 = vpop.permute.xlu0 %413
        %415 = vrot.lane.b32.xlu0 %v384, 96
        %v416 = vpop.permute.xlu0 %415
        %s425 = scalar_lea.vmem %s216, 8 [#allocation7]
        %426 = vst.msk [vmem:[%s425] sm:$0xff] %vm247, %v402
        %427 = vst.msk [vmem:[%s425 + $0x10] sm:$0xff] %vm247, %v404
        %428 = vst.msk [vmem:[%s425 + $0x20] sm:$0xff] %vm247, %v406
        %429 = vst.msk [vmem:[%s425 + $0x30] sm:$0xff] %vm247, %v408
        %430 = vst.msk [vmem:[%s425 + $0x40] sm:$0xff] %vm247, %v410
        %431 = vst.msk [vmem:[%s425 + $0x50] sm:$0xff] %vm247, %v412
        %432 = vst.msk [vmem:[%s425 + $0x60] sm:$0xff] %vm247, %v414
        %433 = vst.msk [vmem:[%s425 + $0x70] sm:$0xff] %vm247, %v416
        %434 = vrot.lane.b32.xlu0 %v377, 64
        %v435 = vpop.permute.xlu0 %434
        %436 = vrot.lane.b32.xlu0 %v378, 64
        %v437 = vpop.permute.xlu0 %436
        %438 = vrot.lane.b32.xlu0 %v379, 64
        %v439 = vpop.permute.xlu0 %438
        %440 = vrot.lane.b32.xlu0 %v380, 64
        %v441 = vpop.permute.xlu0 %440
        %442 = vrot.lane.b32.xlu0 %v381, 64
        %v443 = vpop.permute.xlu0 %442
        %444 = vrot.lane.b32.xlu0 %v382, 64
        %v445 = vpop.permute.xlu0 %444
        %446 = vrot.lane.b32.xlu0 %v383, 64
        %v447 = vpop.permute.xlu0 %446
        %448 = vrot.lane.b32.xlu0 %v384, 64
        %v449 = vpop.permute.xlu0 %448
        %s458 = scalar_lea.vmem %s216, 128 [#allocation7]
        %459 = vst.msk [vmem:[%s458] sm:$0xff] %vm247, %v435
        %460 = vst.msk [vmem:[%s458 + $0x10] sm:$0xff] %vm247, %v437
        %461 = vst.msk [vmem:[%s458 + $0x20] sm:$0xff] %vm247, %v439
        %462 = vst.msk [vmem:[%s458 + $0x30] sm:$0xff] %vm247, %v441
        %463 = vst.msk [vmem:[%s458 + $0x40] sm:$0xff] %vm247, %v443
        %464 = vst.msk [vmem:[%s458 + $0x50] sm:$0xff] %vm247, %v445
        %465 = vst.msk [vmem:[%s458 + $0x60] sm:$0xff] %vm247, %v447
        %466 = vst.msk [vmem:[%s458 + $0x70] sm:$0xff] %vm247, %v449
        %467 = vrot.lane.b32.xlu0 %v377, 32
        %v468 = vpop.permute.xlu0 %467
        %469 = vrot.lane.b32.xlu0 %v378, 32
        %v470 = vpop.permute.xlu0 %469
        %471 = vrot.lane.b32.xlu0 %v379, 32
        %v472 = vpop.permute.xlu0 %471
        %473 = vrot.lane.b32.xlu0 %v380, 32
        %v474 = vpop.permute.xlu0 %473
        %475 = vrot.lane.b32.xlu0 %v381, 32
        %v476 = vpop.permute.xlu0 %475
        %477 = vrot.lane.b32.xlu0 %v382, 32
        %v478 = vpop.permute.xlu0 %477
        %479 = vrot.lane.b32.xlu0 %v383, 32
        %v480 = vpop.permute.xlu0 %479
        %481 = vrot.lane.b32.xlu0 %v384, 32
        %v482 = vpop.permute.xlu0 %481
        %s491 = scalar_lea.vmem %s216, 136 [#allocation7]
        %492 = vst.msk [vmem:[%s491] sm:$0xff] %vm247, %v468
        %493 = vst.msk [vmem:[%s491 + $0x10] sm:$0xff] %vm247, %v470
        %494 = vst.msk [vmem:[%s491 + $0x20] sm:$0xff] %vm247, %v472
        %495 = vst.msk [vmem:[%s491 + $0x30] sm:$0xff] %vm247, %v474
        %496 = vst.msk [vmem:[%s491 + $0x40] sm:$0xff] %vm247, %v476
        %497 = vst.msk [vmem:[%s491 + $0x50] sm:$0xff] %vm247, %v478
        %498 = vst.msk [vmem:[%s491 + $0x60] sm:$0xff] %vm247, %v480
        %499 = vst.msk [vmem:[%s491 + $0x70] sm:$0xff] %vm247, %v482
        %s500 = sand.u32 %s111, 1
        %s501 = scalar_lea.sflag [#allocation4], %s500
        %s502 = sand.u32 %s111, 1
        %s503 = smul.addr %s502, 256
        %s504 = scalar_lea.vmem [#allocation7], %s503
        // Predicated region
        $region41: #{tpu_custom_call.1} parent=31 // pred_check
          %p505 = pneg %p121
        $region42: #{tpu_custom_call.1} parent=31 // pred_check_branch
          %507 = sbr.rel (%p505) target = $region44
        $region43: #{tpu_custom_call.1} parent=31 // pred_region
          %s508 = smul.u32 8, %s24
          %s510 = ssub.s32 4096, 4096
          %511 = vsyncadd %s501, %s510
          %s512 = smul.addr %s508, 2
          %s513 = smul.addr %s23, 32
          %s514 = sadd.s32 %s512, %s513
          %s515 = smul.addr %s514, 128
          %s516 = scalar_lea.hbm %s3, %s515
          %s517 = sshll.u32 %s504, 4
          %s518 = int_to_ptr.vmem [resolvable:$true] %s517
          %523 = dma.vmem_to_hbm [thread:$0]  %s518, 4096, %s516, %s501, 128, 128, 8
        $region44: #{tpu_custom_call.1} parent=31 // pred_fallthru
          _
      $region32: #{tpu_custom_call.1} parent=5 // pred_fallthru
        _
      %p524 = scmp.le.s32.totalorder 2, %s14
      // Predicated region
      $region45: #{tpu_custom_call.1} parent=5 // pred_check
        %p525 = pneg %p524
      $region46: #{tpu_custom_call.1} parent=5 // pred_check_branch
        %527 = sbr.rel (%p525) target = $region48
      $region47: #{tpu_custom_call.1} parent=5 // pred_region
        %s528 = ssub.s32 %s14, 2
        // Predicated region
        $region49: #{tpu_custom_call.1} parent=47 // pred_check
          %p529 = pneg %p127
        $region50: #{tpu_custom_call.1} parent=47 // pred_check_branch
          %531 = sbr.rel (%p529) target = $region52
        $region51: #{tpu_custom_call.1} parent=47 // pred_region
          %s532 = sand.u32 %s112, 1
          %s533 = scalar_lea.sflag [#allocation4], %s532
          %s534 = sand.u32 %s112, 1
          %s535 = smul.addr %s534, 256
          %s536 = scalar_lea.vmem [#allocation7], %s535
          %537 = dma.done %s533, 4096
        $region52: #{tpu_custom_call.1} parent=47 // pred_fallthru
          _
      $region48: #{tpu_custom_call.1} parent=5 // pred_fallthru
        _
    $region6: #{tpu_custom_call.1} parent=1 // loop_footer
      %s18 = sadd.s32 1, %s14
    $region7: #{tpu_custom_call.1} parent=1 // loop_footer_branch
      %13 = sbr.rel target = $region3
    $region8: #{tpu_custom_call.1} parent=1 // loop_exit
      _
    %538 = vsyncpa [#allocation3], 1
    %s539 = scalar_lea.sflag [#allocation3], 1
    %540 = vsyncpa %s539, 1
    %541 = vsyncpa [#allocation6], 1
    %542 = vsyncpa [#allocation4], 1
    %s543 = scalar_lea.sflag [#allocation4], 1
    %544 = vsyncpa %s543, 1

</llo_original>
